<compile_context>
chip_gen: v7x
topology: tpu7x:2x2x1
jax: 0.10.0
libtpu: 0.0.40
codegen_flags: <defaults>
</compile_context>

<pallas_src>
import functools

import jax
import jax.numpy as jnp
from jax import lax
from jax.experimental import pallas as pl
from jax.experimental.pallas import tpu as pltpu

_EPS = 1e-8
_LANES = 128
_MAX_TILE_ROWS = 2048  # 2048*128*4 B = 1 MiB per f32 block; 2 inputs x 2 buffers = 4 MiB VMEM


def _round_up(a, b):
    return ((a + b - 1) // b) * b


def _vggloss_kernel(x_ref, y_ref, out_ref,
                    vmin_x, vmax_x, vmin_y, vmax_y, vsum, stats,
                    *, inv_n, valid_in_last, needs_mask):
    # grid = (2, T): axis 0 = pass (0: min/max, 1: L1 sum), axis 1 = row tile.
    p = pl.program_id(0)
    t = pl.program_id(1)
    is_last = t == pl.num_programs(1) - 1
    tr, lanes = x_ref.shape  # tr is always a multiple of 8 (see wrapper)

    def tile_reduce(v, op):
        # (tr, 128) -> (8, 128): elementwise reduce across vregs (VPU, no XLU).
        return op(v.reshape(tr // 8, 8, lanes), axis=0)

    def make_mask():
        # Tile-local flat index (max tr*128 - 1 < 2^19, no int32 overflow).
        row = lax.broadcasted_iota(jnp.int32, (tr, lanes), 0)
        col = lax.broadcasted_iota(jnp.int32, (tr, lanes), 1)
        return (row * lanes + col) < valid_in_last

    @pl.when((p == 0) & (t == 0))
    def _init():
        vmin_x[...] = jnp.full((8, lanes), jnp.inf, jnp.float32)
        vmax_x[...] = jnp.full((8, lanes), -jnp.inf, jnp.float32)
        vmin_y[...] = jnp.full((8, lanes), jnp.inf, jnp.float32)
        vmax_y[...] = jnp.full((8, lanes), -jnp.inf, jnp.float32)
        vsum[...] = jnp.zeros((8, lanes), jnp.float32)

    def minmax_update(apply_mask):
        xv = x_ref[...].astype(jnp.float32)
        yv = y_ref[...].astype(jnp.float32)
        if apply_mask:
            m = make_mask()
            x_lo = jnp.where(m, xv, jnp.inf)
            x_hi = jnp.where(m, xv, -jnp.inf)
            y_lo = jnp.where(m, yv, jnp.inf)
            y_hi = jnp.where(m, yv, -jnp.inf)
        else:
            x_lo = x_hi = xv
            y_lo = y_hi = yv
        vmin_x[...] = jnp.minimum(vmin_x[...], tile_reduce(x_lo, jnp.min))
        vmax_x[...] = jnp.maximum(vmax_x[...], tile_reduce(x_hi, jnp.max))
        vmin_y[...] = jnp.minimum(vmin_y[...], tile_reduce(y_lo, jnp.min))
        vmax_y[...] = jnp.maximum(vmax_y[...], tile_reduce(y_hi, jnp.max))

    def l1_update(apply_mask):
        xv = x_ref[...].astype(jnp.float32)
        yv = y_ref[...].astype(jnp.float32)
        d = jnp.abs((xv - stats[0]) * stats[1] - (yv - stats[2]) * stats[3])
        if apply_mask:
            d = jnp.where(make_mask(), d, 0.0)
        vsum[...] = vsum[...] + tile_reduce(d, jnp.sum)

    # ---- pass 0: global min/max of x and y (mask only on the last tile) ----
    if needs_mask:
        @pl.when((p == 0) & jnp.logical_not(is_last))
        def _():
            minmax_update(False)

        @pl.when((p == 0) & is_last)
        def _():
            minmax_update(True)
    else:
        @pl.when(p == 0)
        def _():
            minmax_update(False)

    # ---- hoist normalization scalars once, at the start of pass 1 ----------
    @pl.when((p == 1) & (t == 0))
    def _hoist():
        mn_x = jnp.min(vmin_x[...])
        mx_x = jnp.max(vmax_x[...])
        mn_y = jnp.min(vmin_y[...])
        mx_y = jnp.max(vmax_y[...])
        stats[0] = mn_x
        stats[1] = 1.0 / (mx_x - mn_x + _EPS)
        stats[2] = mn_y
        stats[3] = 1.0 / (mx_y - mn_y + _EPS)

    # ---- pass 1: accumulate sum |x_norm - y_norm| ---------------------------
    if needs_mask:
        @pl.when((p == 1) & jnp.logical_not(is_last))
        def _():
            l1_update(False)

        @pl.when((p == 1) & is_last)
        def _():
            l1_update(True)
    else:
        @pl.when(p == 1)
        def _():
            l1_update(False)

    @pl.when((p == 1) & is_last)
    def _finalize():
        out_ref[0] = jnp.sum(vsum[...]) * jnp.float32(inv_n)


def vgg_loss_forward(x, y):
    """Forward of VGGLoss: min-max normalize flattened x and y, return scalar L1 loss."""
    # torch `.float()` semantics: non-float inputs upcast on host; native f32/bf16/f16
    # are streamed in their storage dtype and upcast in-register inside the kernel.
    if x.dtype.name not in ("float32", "bfloat16", "float16"):
        x = x.astype(jnp.float32)
    if y.dtype.name not in ("float32", "bfloat16", "float16"):
        y = y.astype(jnp.float32)

    xf = x.reshape(-1)
    yf = y.reshape(-1)
    assert xf.size == yf.size, "x and y must have the same number of elements"
    n = int(xf.size)

    rows = pl.cdiv(n, _LANES)
    if rows <= _MAX_TILE_ROWS:
        # Single tile: block == full (slightly row-padded) array dims.
        tile_rows = _round_up(rows, 8)
        rows_arr = tile_rows
        num_tiles = 1
    else:
        # Multi-tile: fixed 1 MiB blocks; trailing partial block handled in-kernel.
        tile_rows = _MAX_TILE_ROWS
        rows_arr = rows
        num_tiles = pl.cdiv(rows, tile_rows)

    pad = rows_arr * _LANES - n
    if pad:
        # TODO(synk): for very large inputs with n % 128 != 0 this still materializes one
        # padded copy; a fully pad-free path would need a manual (pl.ANY) DMA of the tail.
        xf = jnp.pad(xf, (0, pad))
        yf = jnp.pad(yf, (0, pad))
    x2 = xf.reshape(rows_arr, _LANES)
    y2 = yf.reshape(rows_arr, _LANES)

    covered = num_tiles * tile_rows * _LANES
    needs_mask = covered != n
    valid_in_last = n - (num_tiles - 1) * tile_rows * _LANES

    kernel = functools.partial(
        _vggloss_kernel,
        inv_n=1.0 / n,
        valid_in_last=valid_in_last,
        needs_mask=needs_mask,
    )

    out = pl.pallas_call(
        kernel,
        out_shape=jax.ShapeDtypeStruct((1,), jnp.float32),
        grid=(2, num_tiles),
        in_specs=[
            pl.BlockSpec((tile_rows, _LANES), lambda p, t: (t, 0)),
            pl.BlockSpec((tile_rows, _LANES), lambda p, t: (t, 0)),
        ],
        out_specs=pl.BlockSpec(memory_space=pltpu.MemorySpace.SMEM),
        scratch_shapes=[
            pltpu.VMEM((8, _LANES), jnp.float32),  # running min(x)
            pltpu.VMEM((8, _LANES), jnp.float32),  # running max(x)
            pltpu.VMEM((8, _LANES), jnp.float32),  # running min(y)
            pltpu.VMEM((8, _LANES), jnp.float32),  # running max(y)
            pltpu.VMEM((8, _LANES), jnp.float32),  # running sum |x_n - y_n|
            pltpu.SMEM((4,), jnp.float32),         # hoisted mn_x, 1/dx, mn_y, 1/dy
        ],
        compiler_params=pltpu.CompilerParams(
            # Both grid axes carry state through scratch -> sequential.
            dimension_semantics=("arbitrary", "arbitrary"),
        ),
    )(x2, y2)
    return out[0]


# ---------------------------------------------------------------------------
# Pure-JAX reference (independent path) for a correctness check.
# ---------------------------------------------------------------------------
def _reference(x, y):
    xf = x.astype(jnp.float32).reshape(-1)
    yf = y.astype(jnp.float32).reshape(-1)
    xn = (xf - jnp.min(xf)) / (jnp.max(xf) - jnp.min(xf) + _EPS)
    yn = (yf - jnp.min(yf)) / (jnp.max(yf) - jnp.min(yf) + _EPS)
    return jnp.mean(jnp.abs(xn - yn))


if __name__ == "__main__":
    key = jax.random.PRNGKey(0)
    kx, ky = jax.random.split(key)

    # Small image-like pair (fake vs. real): single-tile path with a ragged tail.
    x = jax.random.normal(kx, (2, 3, 16, 16), dtype=jnp.float32)
    y = 0.5 * jax.random.normal(ky, (2, 3, 16, 16), dtype=jnp.float32) + 0.1
    loss = jax.block_until_ready(vgg_loss_forward(x, y))
    ref = _reference(x, y)
    assert loss.shape == ()
    assert abs(float(loss) - float(ref)) < 1e-5, (float(loss), float(ref))

    # bf16 inputs: streamed in native dtype and upcast in-kernel (single tile, no pad).
    xh = jax.random.uniform(kx, (2, 3, 64, 64), dtype=jnp.float32).astype(jnp.bfloat16)
    yh = jax.random.uniform(ky, (2, 3, 64, 64), dtype=jnp.float32).astype(jnp.bfloat16)
    loss_h = jax.block_until_ready(vgg_loss_forward(xh, yh))
    ref_h = _reference(xh, yh)
    assert abs(float(loss_h) - float(ref_h)) < 1e-5, (float(loss_h), float(ref_h))

    # VGG-sized images: multi-tile grid with a partial (masked) trailing block, no host pad.
    xb = jax.random.uniform(kx, (2, 3, 224, 224), dtype=jnp.float32)
    yb = jax.random.uniform(ky, (2, 3, 224, 224), dtype=jnp.float32)
    loss_b = jax.block_until_ready(vgg_loss_forward(xb, yb))
    ref_b = _reference(xb, yb)
    assert abs(float(loss_b) - float(ref_b)) < 1e-4, (float(loss_b), float(ref_b))

    print("KERNEL_OK")
</pallas_src>

<mosaic_0001>
module attributes {stable_mosaic.version = 11 : i64} {
  func.func @_vggloss_kernel(%arg0: i32, %arg1: i32, %arg2: memref<16x128xf32, #tpu.memory_space<vmem>>, %arg3: memref<16x128xf32, #tpu.memory_space<vmem>>, %arg4: memref<1xf32, #tpu.memory_space<smem>>, %arg5: memref<8x128xf32, #tpu.memory_space<vmem>>, %arg6: memref<8x128xf32, #tpu.memory_space<vmem>>, %arg7: memref<8x128xf32, #tpu.memory_space<vmem>>, %arg8: memref<8x128xf32, #tpu.memory_space<vmem>>, %arg9: memref<8x128xf32, #tpu.memory_space<vmem>>, %arg10: memref<4xf32, #tpu.memory_space<smem>>) attributes {dimension_semantics = [#tpu.dimension_semantics<arbitrary>, #tpu.dimension_semantics<arbitrary>], iteration_bounds = array<i64: 2, 1>, scalar_prefetch = 0 : i64, scratch_operands = 6 : i64, tpu.core_type = #tpu.core_type<tc>, window_params = [{transform_indices = @transform_0, window_bounds = array<i64: 16, 128>}, {transform_indices = @transform_1, window_bounds = array<i64: 16, 128>}, {transform_indices = @transform_2, window_bounds = array<i64: 1>}]} {
    %c0_i32 = arith.constant 0 : i32
    %0 = arith.cmpi eq, %arg1, %c0_i32 : i32
    %c0_i32_0 = arith.constant 0 : i32
    %1 = arith.cmpi eq, %arg0, %c0_i32_0 : i32
    %c0_i32_1 = arith.constant 0 : i32
    %2 = arith.cmpi eq, %arg1, %c0_i32_1 : i32
    %3 = arith.andi %1, %2 : i1
    %4 = arith.extui %3 : i1 to i32
    %c0_i32_2 = arith.constant 0 : i32
    %5 = arith.cmpi ne, %4, %c0_i32_2 : i32
    scf.if %5 {
      %cst = arith.constant 0x7F800000 : f32
      %33 = vector.broadcast %cst : f32 to vector<8x128xf32>
      %c0 = arith.constant 0 : index
      %c0_16 = arith.constant 0 : index
      %34 = vector.load %arg5[%c0, %c0_16] : memref<8x128xf32, #tpu.memory_space<vmem>>, vector<8x128xf32>
      tpu.vector_store %arg5[%c0, %c0_16], %33 {strides = array<i32>} : memref<8x128xf32, #tpu.memory_space<vmem>>, vector<8x128xf32>,
      %cst_17 = arith.constant 0xFF800000 : f32
      %35 = vector.broadcast %cst_17 : f32 to vector<8x128xf32>
      %c0_18 = arith.constant 0 : index
      %c0_19 = arith.constant 0 : index
      %36 = vector.load %arg6[%c0_18, %c0_19] : memref<8x128xf32, #tpu.memory_space<vmem>>, vector<8x128xf32>
      tpu.vector_store %arg6[%c0_18, %c0_19], %35 {strides = array<i32>} : memref<8x128xf32, #tpu.memory_space<vmem>>, vector<8x128xf32>,
      %cst_20 = arith.constant 0x7F800000 : f32
      %37 = vector.broadcast %cst_20 : f32 to vector<8x128xf32>
      %c0_21 = arith.constant 0 : index
      %c0_22 = arith.constant 0 : index
      %38 = vector.load %arg7[%c0_21, %c0_22] : memref<8x128xf32, #tpu.memory_space<vmem>>, vector<8x128xf32>
      tpu.vector_store %arg7[%c0_21, %c0_22], %37 {strides = array<i32>} : memref<8x128xf32, #tpu.memory_space<vmem>>, vector<8x128xf32>,
      %cst_23 = arith.constant 0xFF800000 : f32
      %39 = vector.broadcast %cst_23 : f32 to vector<8x128xf32>
      %c0_24 = arith.constant 0 : index
      %c0_25 = arith.constant 0 : index
      %40 = vector.load %arg8[%c0_24, %c0_25] : memref<8x128xf32, #tpu.memory_space<vmem>>, vector<8x128xf32>
      tpu.vector_store %arg8[%c0_24, %c0_25], %39 {strides = array<i32>} : memref<8x128xf32, #tpu.memory_space<vmem>>, vector<8x128xf32>,
      %cst_26 = arith.constant 0.000000e+00 : f32
      %41 = vector.broadcast %cst_26 : f32 to vector<8x128xf32>
      %c0_27 = arith.constant 0 : index
      %c0_28 = arith.constant 0 : index
      %42 = vector.load %arg9[%c0_27, %c0_28] : memref<8x128xf32, #tpu.memory_space<vmem>>, vector<8x128xf32>
      tpu.vector_store %arg9[%c0_27, %c0_28], %41 {strides = array<i32>} : memref<8x128xf32, #tpu.memory_space<vmem>>, vector<8x128xf32>,
    } else {
    }
    %c0_i32_3 = arith.constant 0 : i32
    %6 = arith.cmpi eq, %arg0, %c0_i32_3 : i32
    %true = arith.constant true
    %7 = arith.xori %0, %true : i1
    %8 = arith.andi %6, %7 : i1
    %9 = arith.extui %8 : i1 to i32
    %c0_i32_4 = arith.constant 0 : i32
    %10 = arith.cmpi ne, %9, %c0_i32_4 : i32
    scf.if %10 {
      %c0 = arith.constant 0 : index
      %c0_16 = arith.constant 0 : index
      %33 = vector.load %arg2[%c0, %c0_16] : memref<16x128xf32, #tpu.memory_space<vmem>>, vector<16x128xf32>
      %c0_17 = arith.constant 0 : index
      %c0_18 = arith.constant 0 : index
      %34 = vector.load %arg3[%c0_17, %c0_18] : memref<16x128xf32, #tpu.memory_space<vmem>>, vector<16x128xf32>
      %c0_19 = arith.constant 0 : index
      %c0_20 = arith.constant 0 : index
      %35 = vector.load %arg5[%c0_19, %c0_20] : memref<8x128xf32, #tpu.memory_space<vmem>>, vector<8x128xf32>
      %36 = vector.shape_cast %33 : vector<16x128xf32> to vector<2x8x128xf32>
      %cst = arith.constant dense<0x7F800000> : vector<8x128xf32>
      %37 = vector.multi_reduction <minimumf>, %36, %cst [0] : vector<2x8x128xf32> to vector<8x128xf32>
      %38 = arith.minimumf %35, %37 : vector<8x128xf32>
      %c0_21 = arith.constant 0 : index
      %c0_22 = arith.constant 0 : index
      %39 = vector.load %arg5[%c0_21, %c0_22] : memref<8x128xf32, #tpu.memory_space<vmem>>, vector<8x128xf32>
      tpu.vector_store %arg5[%c0_21, %c0_22], %38 {strides = array<i32>} : memref<8x128xf32, #tpu.memory_space<vmem>>, vector<8x128xf32>,
      %c0_23 = arith.constant 0 : index
      %c0_24 = arith.constant 0 : index
      %40 = vector.load %arg6[%c0_23, %c0_24] : memref<8x128xf32, #tpu.memory_space<vmem>>, vector<8x128xf32>
      %41 = vector.shape_cast %33 : vector<16x128xf32> to vector<2x8x128xf32>
      %cst_25 = arith.constant dense<0xFF800000> : vector<8x128xf32>
      %42 = vector.multi_reduction <maximumf>, %41, %cst_25 [0] : vector<2x8x128xf32> to vector<8x128xf32>
      %43 = arith.maximumf %40, %42 : vector<8x128xf32>
      %c0_26 = arith.constant 0 : index
      %c0_27 = arith.constant 0 : index
      %44 = vector.load %arg6[%c0_26, %c0_27] : memref<8x128xf32, #tpu.memory_space<vmem>>, vector<8x128xf32>
      tpu.vector_store %arg6[%c0_26, %c0_27], %43 {strides = array<i32>} : memref<8x128xf32, #tpu.memory_space<vmem>>, vector<8x128xf32>,
      %c0_28 = arith.constant 0 : index
      %c0_29 = arith.constant 0 : index
      %45 = vector.load %arg7[%c0_28, %c0_29] : memref<8x128xf32, #tpu.memory_space<vmem>>, vector<8x128xf32>
      %46 = vector.shape_cast %34 : vector<16x128xf32> to vector<2x8x128xf32>
      %cst_30 = arith.constant dense<0x7F800000> : vector<8x128xf32>
      %47 = vector.multi_reduction <minimumf>, %46, %cst_30 [0] : vector<2x8x128xf32> to vector<8x128xf32>
      %48 = arith.minimumf %45, %47 : vector<8x128xf32>
      %c0_31 = arith.constant 0 : index
      %c0_32 = arith.constant 0 : index
      %49 = vector.load %arg7[%c0_31, %c0_32] : memref<8x128xf32, #tpu.memory_space<vmem>>, vector<8x128xf32>
      tpu.vector_store %arg7[%c0_31, %c0_32], %48 {strides = array<i32>} : memref<8x128xf32, #tpu.memory_space<vmem>>, vector<8x128xf32>,
      %c0_33 = arith.constant 0 : index
      %c0_34 = arith.constant 0 : index
      %50 = vector.load %arg8[%c0_33, %c0_34] : memref<8x128xf32, #tpu.memory_space<vmem>>, vector<8x128xf32>
      %51 = vector.shape_cast %34 : vector<16x128xf32> to vector<2x8x128xf32>
      %cst_35 = arith.constant dense<0xFF800000> : vector<8x128xf32>
      %52 = vector.multi_reduction <maximumf>, %51, %cst_35 [0] : vector<2x8x128xf32> to vector<8x128xf32>
      %53 = arith.maximumf %50, %52 : vector<8x128xf32>
      %c0_36 = arith.constant 0 : index
      %c0_37 = arith.constant 0 : index
      %54 = vector.load %arg8[%c0_36, %c0_37] : memref<8x128xf32, #tpu.memory_space<vmem>>, vector<8x128xf32>
      tpu.vector_store %arg8[%c0_36, %c0_37], %53 {strides = array<i32>} : memref<8x128xf32, #tpu.memory_space<vmem>>, vector<8x128xf32>,
    } else {
    }
    %c0_i32_5 = arith.constant 0 : i32
    %11 = arith.cmpi eq, %arg0, %c0_i32_5 : i32
    %12 = arith.andi %11, %0 : i1
    %13 = arith.extui %12 : i1 to i32
    %c0_i32_6 = arith.constant 0 : i32
    %14 = arith.cmpi ne, %13, %c0_i32_6 : i32
    scf.if %14 {
      %c0 = arith.constant 0 : index
      %c0_16 = arith.constant 0 : index
      %33 = vector.load %arg2[%c0, %c0_16] : memref<16x128xf32, #tpu.memory_space<vmem>>, vector<16x128xf32>
      %c0_17 = arith.constant 0 : index
      %c0_18 = arith.constant 0 : index
      %34 = vector.load %arg3[%c0_17, %c0_18] : memref<16x128xf32, #tpu.memory_space<vmem>>, vector<16x128xf32>
      %35 = tpu.iota {dimensions = array<i32: 0>} : vector<16x128xi32>
      %36 = tpu.iota {dimensions = array<i32: 1>} : vector<16x128xi32>
      %c128_i32 = arith.constant 128 : i32
      %37 = vector.broadcast %c128_i32 : i32 to vector<16x128xi32>
      %38 = arith.muli %35, %37 : vector<16x128xi32>
      %39 = arith.addi %38, %36 : vector<16x128xi32>
      %c1536_i32 = arith.constant 1536 : i32
      %40 = vector.broadcast %c1536_i32 : i32 to vector<16x128xi32>
      %41 = arith.cmpi slt, %39, %40 : vector<16x128xi32>
      %cst = arith.constant 0x7F800000 : f32
      %42 = vector.broadcast %cst : f32 to vector<16x128xf32>
      %43 = arith.select %41, %33, %42 : vector<16x128xi1>, vector<16x128xf32>
      %cst_19 = arith.constant 0xFF800000 : f32
      %44 = vector.broadcast %cst_19 : f32 to vector<16x128xf32>
      %45 = arith.select %41, %33, %44 : vector<16x128xi1>, vector<16x128xf32>
      %cst_20 = arith.constant 0x7F800000 : f32
      %46 = vector.broadcast %cst_20 : f32 to vector<16x128xf32>
      %47 = arith.select %41, %34, %46 : vector<16x128xi1>, vector<16x128xf32>
      %cst_21 = arith.constant 0xFF800000 : f32
      %48 = vector.broadcast %cst_21 : f32 to vector<16x128xf32>
      %49 = arith.select %41, %34, %48 : vector<16x128xi1>, vector<16x128xf32>
      %c0_22 = arith.constant 0 : index
      %c0_23 = arith.constant 0 : index
      %50 = vector.load %arg5[%c0_22, %c0_23] : memref<8x128xf32, #tpu.memory_space<vmem>>, vector<8x128xf32>
      %51 = vector.shape_cast %43 : vector<16x128xf32> to vector<2x8x128xf32>
      %cst_24 = arith.constant dense<0x7F800000> : vector<8x128xf32>
      %52 = vector.multi_reduction <minimumf>, %51, %cst_24 [0] : vector<2x8x128xf32> to vector<8x128xf32>
      %53 = arith.minimumf %50, %52 : vector<8x128xf32>
      %c0_25 = arith.constant 0 : index
      %c0_26 = arith.constant 0 : index
      %54 = vector.load %arg5[%c0_25, %c0_26] : memref<8x128xf32, #tpu.memory_space<vmem>>, vector<8x128xf32>
      tpu.vector_store %arg5[%c0_25, %c0_26], %53 {strides = array<i32>} : memref<8x128xf32, #tpu.memory_space<vmem>>, vector<8x128xf32>,
      %c0_27 = arith.constant 0 : index
      %c0_28 = arith.constant 0 : index
      %55 = vector.load %arg6[%c0_27, %c0_28] : memref<8x128xf32, #tpu.memory_space<vmem>>, vector<8x128xf32>
      %56 = vector.shape_cast %45 : vector<16x128xf32> to vector<2x8x128xf32>
      %cst_29 = arith.constant dense<0xFF800000> : vector<8x128xf32>
      %57 = vector.multi_reduction <maximumf>, %56, %cst_29 [0] : vector<2x8x128xf32> to vector<8x128xf32>
      %58 = arith.maximumf %55, %57 : vector<8x128xf32>
      %c0_30 = arith.constant 0 : index
      %c0_31 = arith.constant 0 : index
      %59 = vector.load %arg6[%c0_30, %c0_31] : memref<8x128xf32, #tpu.memory_space<vmem>>, vector<8x128xf32>
      tpu.vector_store %arg6[%c0_30, %c0_31], %58 {strides = array<i32>} : memref<8x128xf32, #tpu.memory_space<vmem>>, vector<8x128xf32>,
      %c0_32 = arith.constant 0 : index
      %c0_33 = arith.constant 0 : index
      %60 = vector.load %arg7[%c0_32, %c0_33] : memref<8x128xf32, #tpu.memory_space<vmem>>, vector<8x128xf32>
      %61 = vector.shape_cast %47 : vector<16x128xf32> to vector<2x8x128xf32>
      %cst_34 = arith.constant dense<0x7F800000> : vector<8x128xf32>
      %62 = vector.multi_reduction <minimumf>, %61, %cst_34 [0] : vector<2x8x128xf32> to vector<8x128xf32>
      %63 = arith.minimumf %60, %62 : vector<8x128xf32>
      %c0_35 = arith.constant 0 : index
      %c0_36 = arith.constant 0 : index
      %64 = vector.load %arg7[%c0_35, %c0_36] : memref<8x128xf32, #tpu.memory_space<vmem>>, vector<8x128xf32>
      tpu.vector_store %arg7[%c0_35, %c0_36], %63 {strides = array<i32>} : memref<8x128xf32, #tpu.memory_space<vmem>>, vector<8x128xf32>,
      %c0_37 = arith.constant 0 : index
      %c0_38 = arith.constant 0 : index
      %65 = vector.load %arg8[%c0_37, %c0_38] : memref<8x128xf32, #tpu.memory_space<vmem>>, vector<8x128xf32>
      %66 = vector.shape_cast %49 : vector<16x128xf32> to vector<2x8x128xf32>
      %cst_39 = arith.constant dense<0xFF800000> : vector<8x128xf32>
      %67 = vector.multi_reduction <maximumf>, %66, %cst_39 [0] : vector<2x8x128xf32> to vector<8x128xf32>
      %68 = arith.maximumf %65, %67 : vector<8x128xf32>
      %c0_40 = arith.constant 0 : index
      %c0_41 = arith.constant 0 : index
      %69 = vector.load %arg8[%c0_40, %c0_41] : memref<8x128xf32, #tpu.memory_space<vmem>>, vector<8x128xf32>
      tpu.vector_store %arg8[%c0_40, %c0_41], %68 {strides = array<i32>} : memref<8x128xf32, #tpu.memory_space<vmem>>, vector<8x128xf32>,
    } else {
    }
    %c1_i32 = arith.constant 1 : i32
    %15 = arith.cmpi eq, %arg0, %c1_i32 : i32
    %c0_i32_7 = arith.constant 0 : i32
    %16 = arith.cmpi eq, %arg1, %c0_i32_7 : i32
    %17 = arith.andi %15, %16 : i1
    %18 = arith.extui %17 : i1 to i32
    %c0_i32_8 = arith.constant 0 : i32
    %19 = arith.cmpi ne, %18, %c0_i32_8 : i32
    scf.if %19 {
      %c0 = arith.constant 0 : index
      %c0_16 = arith.constant 0 : index
      %33 = vector.load %arg5[%c0, %c0_16] : memref<8x128xf32, #tpu.memory_space<vmem>>, vector<8x128xf32>
      %34 = vector.shape_cast %33 : vector<8x128xf32> to vector<1x8x128xf32>
      %cst = arith.constant dense<0x7F800000> : vector<1xf32>
      %35 = vector.multi_reduction <minimumf>, %34, %cst [1, 2] : vector<1x8x128xf32> to vector<1xf32>
      %36 = vector.shape_cast %35 : vector<1xf32> to vector<1x1x1xf32>
      %37 = vector.extract %36[0, 0, 0] : f32 from vector<1x1x1xf32>
      %c0_17 = arith.constant 0 : index
      %c0_18 = arith.constant 0 : index
      %38 = vector.load %arg6[%c0_17, %c0_18] : memref<8x128xf32, #tpu.memory_space<vmem>>, vector<8x128xf32>
      %39 = vector.shape_cast %38 : vector<8x128xf32> to vector<1x8x128xf32>
      %cst_19 = arith.constant dense<0xFF800000> : vector<1xf32>
      %40 = vector.multi_reduction <maximumf>, %39, %cst_19 [1, 2] : vector<1x8x128xf32> to vector<1xf32>
      %41 = vector.shape_cast %40 : vector<1xf32> to vector<1x1x1xf32>
      %42 = vector.extract %41[0, 0, 0] : f32 from vector<1x1x1xf32>
      %c0_20 = arith.constant 0 : index
      %c0_21 = arith.constant 0 : index
      %43 = vector.load %arg7[%c0_20, %c0_21] : memref<8x128xf32, #tpu.memory_space<vmem>>, vector<8x128xf32>
      %44 = vector.shape_cast %43 : vector<8x128xf32> to vector<1x8x128xf32>
      %cst_22 = arith.constant dense<0x7F800000> : vector<1xf32>
      %45 = vector.multi_reduction <minimumf>, %44, %cst_22 [1, 2] : vector<1x8x128xf32> to vector<1xf32>
      %46 = vector.shape_cast %45 : vector<1xf32> to vector<1x1x1xf32>
      %47 = vector.extract %46[0, 0, 0] : f32 from vector<1x1x1xf32>
      %c0_23 = arith.constant 0 : index
      %c0_24 = arith.constant 0 : index
      %48 = vector.load %arg8[%c0_23, %c0_24] : memref<8x128xf32, #tpu.memory_space<vmem>>, vector<8x128xf32>
      %49 = vector.shape_cast %48 : vector<8x128xf32> to vector<1x8x128xf32>
      %cst_25 = arith.constant dense<0xFF800000> : vector<1xf32>
      %50 = vector.multi_reduction <maximumf>, %49, %cst_25 [1, 2] : vector<1x8x128xf32> to vector<1xf32>
      %51 = vector.shape_cast %50 : vector<1xf32> to vector<1x1x1xf32>
      %52 = vector.extract %51[0, 0, 0] : f32 from vector<1x1x1xf32>
      %c0_26 = arith.constant 0 : index
      %53 = memref.load %arg10[%c0_26] : memref<4xf32, #tpu.memory_space<smem>>
      memref.store %37, %arg10[%c0_26] : memref<4xf32, #tpu.memory_space<smem>>
      %54 = arith.subf %42, %37 : f32
      %cst_27 = arith.constant 9.99999993E-9 : f32
      %55 = arith.addf %54, %cst_27 : f32
      %cst_28 = arith.constant 1.000000e+00 : f32
      %56 = arith.divf %cst_28, %55 : f32
      %c1 = arith.constant 1 : index
      %57 = memref.load %arg10[%c1] : memref<4xf32, #tpu.memory_space<smem>>
      memref.store %56, %arg10[%c1] : memref<4xf32, #tpu.memory_space<smem>>
      %c2 = arith.constant 2 : index
      %58 = memref.load %arg10[%c2] : memref<4xf32, #tpu.memory_space<smem>>
      memref.store %47, %arg10[%c2] : memref<4xf32, #tpu.memory_space<smem>>
      %59 = arith.subf %52, %47 : f32
      %cst_29 = arith.constant 9.99999993E-9 : f32
      %60 = arith.addf %59, %cst_29 : f32
      %cst_30 = arith.constant 1.000000e+00 : f32
      %61 = arith.divf %cst_30, %60 : f32
      %c3 = arith.constant 3 : index
      %62 = memref.load %arg10[%c3] : memref<4xf32, #tpu.memory_space<smem>>
      memref.store %61, %arg10[%c3] : memref<4xf32, #tpu.memory_space<smem>>
    } else {
    }
    %c1_i32_9 = arith.constant 1 : i32
    %20 = arith.cmpi eq, %arg0, %c1_i32_9 : i32
    %true_10 = arith.constant true
    %21 = arith.xori %0, %true_10 : i1
    %22 = arith.andi %20, %21 : i1
    %23 = arith.extui %22 : i1 to i32
    %c0_i32_11 = arith.constant 0 : i32
    %24 = arith.cmpi ne, %23, %c0_i32_11 : i32
    scf.if %24 {
      %c0 = arith.constant 0 : index
      %c0_16 = arith.constant 0 : index
      %33 = vector.load %arg2[%c0, %c0_16] : memref<16x128xf32, #tpu.memory_space<vmem>>, vector<16x128xf32>
      %c0_17 = arith.constant 0 : index
      %c0_18 = arith.constant 0 : index
      %34 = vector.load %arg3[%c0_17, %c0_18] : memref<16x128xf32, #tpu.memory_space<vmem>>, vector<16x128xf32>
      %c0_19 = arith.constant 0 : index
      %35 = memref.load %arg10[%c0_19] : memref<4xf32, #tpu.memory_space<smem>>
      %36 = vector.broadcast %35 : f32 to vector<16x128xf32>
      %37 = arith.subf %33, %36 : vector<16x128xf32>
      %c1 = arith.constant 1 : index
      %38 = memref.load %arg10[%c1] : memref<4xf32, #tpu.memory_space<smem>>
      %39 = vector.broadcast %38 : f32 to vector<16x128xf32>
      %40 = arith.mulf %37, %39 : vector<16x128xf32>
      %c2 = arith.constant 2 : index
      %41 = memref.load %arg10[%c2] : memref<4xf32, #tpu.memory_space<smem>>
      %42 = vector.broadcast %41 : f32 to vector<16x128xf32>
      %43 = arith.subf %34, %42 : vector<16x128xf32>
      %c3 = arith.constant 3 : index
      %44 = memref.load %arg10[%c3] : memref<4xf32, #tpu.memory_space<smem>>
      %45 = vector.broadcast %44 : f32 to vector<16x128xf32>
      %46 = arith.mulf %43, %45 : vector<16x128xf32>
      %47 = arith.subf %40, %46 : vector<16x128xf32>
      %48 = math.absf %47 : vector<16x128xf32>
      %c0_20 = arith.constant 0 : index
      %c0_21 = arith.constant 0 : index
      %49 = vector.load %arg9[%c0_20, %c0_21] : memref<8x128xf32, #tpu.memory_space<vmem>>, vector<8x128xf32>
      %50 = vector.shape_cast %48 : vector<16x128xf32> to vector<2x8x128xf32>
      %cst = arith.constant dense<0.000000e+00> : vector<8x128xf32>
      %51 = vector.multi_reduction <add>, %50, %cst [0] : vector<2x8x128xf32> to vector<8x128xf32>
      %52 = arith.addf %49, %51 : vector<8x128xf32>
      %c0_22 = arith.constant 0 : index
      %c0_23 = arith.constant 0 : index
      %53 = vector.load %arg9[%c0_22, %c0_23] : memref<8x128xf32, #tpu.memory_space<vmem>>, vector<8x128xf32>
      tpu.vector_store %arg9[%c0_22, %c0_23], %52 {strides = array<i32>} : memref<8x128xf32, #tpu.memory_space<vmem>>, vector<8x128xf32>,
    } else {
    }
    %c1_i32_12 = arith.constant 1 : i32
    %25 = arith.cmpi eq, %arg0, %c1_i32_12 : i32
    %26 = arith.andi %25, %0 : i1
    %27 = arith.extui %26 : i1 to i32
    %c0_i32_13 = arith.constant 0 : i32
    %28 = arith.cmpi ne, %27, %c0_i32_13 : i32
    scf.if %28 {
      %c0 = arith.constant 0 : index
      %c0_16 = arith.constant 0 : index
      %33 = vector.load %arg2[%c0, %c0_16] : memref<16x128xf32, #tpu.memory_space<vmem>>, vector<16x128xf32>
      %c0_17 = arith.constant 0 : index
      %c0_18 = arith.constant 0 : index
      %34 = vector.load %arg3[%c0_17, %c0_18] : memref<16x128xf32, #tpu.memory_space<vmem>>, vector<16x128xf32>
      %c0_19 = arith.constant 0 : index
      %35 = memref.load %arg10[%c0_19] : memref<4xf32, #tpu.memory_space<smem>>
      %36 = vector.broadcast %35 : f32 to vector<16x128xf32>
      %37 = arith.subf %33, %36 : vector<16x128xf32>
      %c1 = arith.constant 1 : index
      %38 = memref.load %arg10[%c1] : memref<4xf32, #tpu.memory_space<smem>>
      %39 = vector.broadcast %38 : f32 to vector<16x128xf32>
      %40 = arith.mulf %37, %39 : vector<16x128xf32>
      %c2 = arith.constant 2 : index
      %41 = memref.load %arg10[%c2] : memref<4xf32, #tpu.memory_space<smem>>
      %42 = vector.broadcast %41 : f32 to vector<16x128xf32>
      %43 = arith.subf %34, %42 : vector<16x128xf32>
      %c3 = arith.constant 3 : index
      %44 = memref.load %arg10[%c3] : memref<4xf32, #tpu.memory_space<smem>>
      %45 = vector.broadcast %44 : f32 to vector<16x128xf32>
      %46 = arith.mulf %43, %45 : vector<16x128xf32>
      %47 = arith.subf %40, %46 : vector<16x128xf32>
      %48 = math.absf %47 : vector<16x128xf32>
      %49 = tpu.iota {dimensions = array<i32: 0>} : vector<16x128xi32>
      %50 = tpu.iota {dimensions = array<i32: 1>} : vector<16x128xi32>
      %c128_i32 = arith.constant 128 : i32
      %51 = vector.broadcast %c128_i32 : i32 to vector<16x128xi32>
      %52 = arith.muli %49, %51 : vector<16x128xi32>
      %53 = arith.addi %52, %50 : vector<16x128xi32>
      %c1536_i32 = arith.constant 1536 : i32
      %54 = vector.broadcast %c1536_i32 : i32 to vector<16x128xi32>
      %55 = arith.cmpi slt, %53, %54 : vector<16x128xi32>
      %cst = arith.constant 0.000000e+00 : f32
      %56 = vector.broadcast %cst : f32 to vector<16x128xf32>
      %57 = arith.select %55, %48, %56 : vector<16x128xi1>, vector<16x128xf32>
      %c0_20 = arith.constant 0 : index
      %c0_21 = arith.constant 0 : index
      %58 = vector.load %arg9[%c0_20, %c0_21] : memref<8x128xf32, #tpu.memory_space<vmem>>, vector<8x128xf32>
      %59 = vector.shape_cast %57 : vector<16x128xf32> to vector<2x8x128xf32>
      %cst_22 = arith.constant dense<0.000000e+00> : vector<8x128xf32>
      %60 = vector.multi_reduction <add>, %59, %cst_22 [0] : vector<2x8x128xf32> to vector<8x128xf32>
      %61 = arith.addf %58, %60 : vector<8x128xf32>
      %c0_23 = arith.constant 0 : index
      %c0_24 = arith.constant 0 : index
      %62 = vector.load %arg9[%c0_23, %c0_24] : memref<8x128xf32, #tpu.memory_space<vmem>>, vector<8x128xf32>
      tpu.vector_store %arg9[%c0_23, %c0_24], %61 {strides = array<i32>} : memref<8x128xf32, #tpu.memory_space<vmem>>, vector<8x128xf32>,
    } else {
    }
    %c1_i32_14 = arith.constant 1 : i32
    %29 = arith.cmpi eq, %arg0, %c1_i32_14 : i32
    %30 = arith.andi %29, %0 : i1
    %31 = arith.extui %30 : i1 to i32
    %c0_i32_15 = arith.constant 0 : i32
    %32 = arith.cmpi ne, %31, %c0_i32_15 : i32
    scf.if %32 {
      %c0 = arith.constant 0 : index
      %c0_16 = arith.constant 0 : index
      %33 = vector.load %arg9[%c0, %c0_16] : memref<8x128xf32, #tpu.memory_space<vmem>>, vector<8x128xf32>
      %34 = vector.shape_cast %33 : vector<8x128xf32> to vector<1x8x128xf32>
      %cst = arith.constant dense<0.000000e+00> : vector<1xf32>
      %35 = vector.multi_reduction <add>, %34, %cst [1, 2] : vector<1x8x128xf32> to vector<1xf32>
      %36 = vector.shape_cast %35 : vector<1xf32> to vector<1x1x1xf32>
      %37 = vector.extract %36[0, 0, 0] : f32 from vector<1x1x1xf32>
      %cst_17 = arith.constant 6.51041686E-4 : f32
      %38 = arith.mulf %37, %cst_17 : f32
      %c0_18 = arith.constant 0 : index
      %39 = memref.load %arg4[%c0_18] : memref<1xf32, #tpu.memory_space<smem>>
      memref.store %38, %arg4[%c0_18] : memref<1xf32, #tpu.memory_space<smem>>
    } else {
    }
    return
  }
  func.func @transform_0(%arg0: i32, %arg1: i32) -> (i32, i32) {
    %c0_i32 = arith.constant 0 : i32
    %c0_i32_0 = arith.constant 0 : i32
    return %arg1, %c0_i32 : i32, i32
  }
  func.func @transform_1(%arg0: i32, %arg1: i32) -> (i32, i32) {
    %c0_i32 = arith.constant 0 : i32
    %c0_i32_0 = arith.constant 0 : i32
    return %arg1, %c0_i32 : i32, i32
  }
  func.func @transform_2(%arg0: i32, %arg1: i32) -> i32 {
    %c0_i32 = arith.constant 0 : i32
    %c0_i32_0 = arith.constant 0 : i32
    return %c0_i32 : i32
  }
}

</mosaic_0001>

<llo_original>
// kernel: tpu_custom_call.1
$region0: #{tpu_custom_call.1}
  #allocation0 [shape = 'u32[]', space=smem, size = 0x4, offset = 0x4, fixed_abs, tag = 'smem constant byte address 0x4 - core index']
  #allocation1 [shape = 'u32[144,128]{1,0:T(1,128)}', space=vmem, size = 0x12000, scoped, tag = 'internal scratch']
  #allocation2 [shape = 'f32[8,128]{1,0:T(8,128)}', space=vmem, size = 0x1000, scoped, tag = 'scratch operand']
  #allocation3 [shape = 'f32[8,128]{1,0:T(8,128)}', space=vmem, size = 0x1000, scoped, tag = 'scratch operand']
  #allocation4 [shape = 'f32[8,128]{1,0:T(8,128)}', space=vmem, size = 0x1000, scoped, tag = 'scratch operand']
  #allocation5 [shape = 'f32[8,128]{1,0:T(8,128)}', space=vmem, size = 0x1000, scoped, tag = 'scratch operand']
  #allocation6 [shape = 'f32[8,128]{1,0:T(8,128)}', space=vmem, size = 0x1000, scoped, tag = 'scratch operand']
  #allocation7 [shape = 'f32[4]{0:T(128)}', space=smem, size = 0x200, scoped, tag = 'scratch operand']
  %s0 = inlined_call_operand.hbm [shape: f32[16,128], index: 0, kind: input, shape index: {}]
  %s1 = inlined_call_operand.hbm [shape: f32[16,128], index: 1, kind: input, shape index: {}]
  %s2 = inlined_call_operand.hbm [shape: f32[1], index: 2, kind: output, shape index: {}]
  %s3 = sld [smem:[#allocation0]]
  $region73: #{tpu_custom_call.1} parent=0
    _
  %s5 = ssub.s32 1, %s3
  %s6 = scalar_select 0, %s5, %s3
  $region1: #{tpu_custom_call.1} parent=0
    #allocation8 [shape = 'u8[8192]{0}', space=vmem, size = 0x2000, scoped, tag = 'input window, operand 0, single buffered']
    #allocation9 [shape = 's32[2]{0}', space=sflag, size = 0x8, scoped, tag = 'scoped memory for tpu_custom_call.1']
    #allocation10 [shape = 's32[2]{0}', space=sflag, size = 0x8, scoped, tag = 'scoped memory for tpu_custom_call.1']
    #allocation11 [shape = 'u8[8192]{0}', space=vmem, size = 0x2000, scoped, tag = 'input window, operand 1, single buffered']
    #allocation12 [shape = 's32[1]{0}', space=sflag, size = 0x4, scoped, tag = 'scoped memory for tpu_custom_call.1']
    #allocation13 [shape = 'u8[512]{0}', space=smem, size = 0x200, scoped, tag = 'output window, operand 0, single buffered']
    %7 = vsyncpa [#allocation9], 0
    %8 = vsyncpa [#allocation12], 0
    %9 = vsyncpa [#allocation10], 0
    loop: start=0, step=1, limit=4
    $region2: #{tpu_custom_call.1} parent=1 // loop_pre_header
      _
    $region3: #{tpu_custom_call.1} parent=1 // loop_header
      %s11 = sphi 0, %s15
      %p12 = scmp.ge.s32.totalorder %s11, 4
      %s18 = sphi 0, %s30
      %s19 = sphi 0, %s26
      %s20 = sphi 0, %s18
      %s21 = sphi 0, %s19
      %s22 = sphi 0, %s20
      %s23 = sphi 0, %s21
      %s33 = sphi 0, %s35
      %s36 = sphi 0, %s33
      %s37 = sphi 0, %s36
      %s53 = sphi 0, %s37
      %s59 = sphi 0, %s61
      %s62 = sphi 0, %s59
      %s63 = sphi 0, %s62
      %s79 = sphi 0, %s63
      %s83 = sphi 0, %s83
      %s85 = sphi 0, %s83
      %s86 = sphi 0, %s85
      %s100 = sphi 0, %s86
    $region4: #{tpu_custom_call.1} parent=1 // loop_header_branch
      %14 = sbr.rel (%p12) target = $region8
    $region5: #{tpu_custom_call.1} parent=1 // loop_body
      %s16 = ssub.s32 %s11, 1
      %s17 = ssub.s32 %s11, 2
      %s24 = sadd.s32 1, %s19
      %p25 = scmp.ge.s32.totalorder %s24, 1
      %s26 = scalar_select %p25, 0, %s24
      %s27 = sadd.s32 1, %s18
      %s28 = scalar_select %p25, %s27, %s18
      %p29 = scmp.ge.s32.totalorder %s28, 2
      %s30 = scalar_select %p29, 0, %s28
      %s31 = ssub.s32 %s19, %s26
      %p32 = scmp.eq.s32.totalorder %s31, 0
      %s34 = sadd.s32 %s33, 1
      %s35 = scalar_select %p32, %s33, %s34
      %p38 = pneg %p32
      %p39 = scmp.eq.s32.totalorder %s11, 1
      %p40 = por %p38, %p39
      %p41 = scmp.ne.s32.totalorder %s33, %s36
      %p42 = scmp.eq.s32.totalorder %s11, 0
      %p43 = por %p41, %p42
      %p44 = scmp.ne.s32.totalorder %s33, %s36
      %p45 = scmp.eq.s32.totalorder %s16, 1
      %p46 = por %p44, %p45
      %p47 = scmp.ne.s32.totalorder %s36, %s37
      %p48 = scmp.eq.s32.totalorder %s16, 0
      %p49 = por %p47, %p48
      %p50 = scmp.ne.s32.totalorder %s36, %s37
      %p51 = scmp.eq.s32.totalorder %s17, 1
      %p52 = por %p50, %p51
      %p54 = scmp.ne.s32.totalorder %s37, %s53
      %p55 = scmp.eq.s32.totalorder %s17, 0
      %p56 = por %p54, %p55
      %s57 = ssub.s32 %s19, %s26
      %p58 = scmp.eq.s32.totalorder %s57, 0
      %s60 = sadd.s32 %s59, 1
      %s61 = scalar_select %p58, %s59, %s60
      %p64 = pneg %p58
      %p65 = scmp.eq.s32.totalorder %s11, 1
      %p66 = por %p64, %p65
      %p67 = scmp.ne.s32.totalorder %s59, %s62
      %p68 = scmp.eq.s32.totalorder %s11, 0
      %p69 = por %p67, %p68
      %p70 = scmp.ne.s32.totalorder %s59, %s62
      %p71 = scmp.eq.s32.totalorder %s16, 1
      %p72 = por %p70, %p71
      %p73 = scmp.ne.s32.totalorder %s62, %s63
      %p74 = scmp.eq.s32.totalorder %s16, 0
      %p75 = por %p73, %p74
      %p76 = scmp.ne.s32.totalorder %s62, %s63
      %p77 = scmp.eq.s32.totalorder %s17, 1
      %p78 = por %p76, %p77
      %p80 = scmp.ne.s32.totalorder %s63, %s79
      %p81 = scmp.eq.s32.totalorder %s17, 0
      %p82 = por %p80, %p81
      %s84 = sadd.s32 %s83, 1
      %p87 = scmp.eq.s32.totalorder %s11, 1
      %p88 = scmp.ne.s32.totalorder %s83, %s85
      %p89 = scmp.eq.s32.totalorder %s11, 0
      %p90 = por %p88, %p89
      %p91 = scmp.ne.s32.totalorder %s83, %s85
      %p92 = scmp.eq.s32.totalorder %s16, 1
      %p93 = por %p91, %p92
      %p94 = scmp.ne.s32.totalorder %s85, %s86
      %p95 = scmp.eq.s32.totalorder %s16, 0
      %p96 = por %p94, %p95
      %p97 = scmp.ne.s32.totalorder %s85, %s86
      %p98 = scmp.eq.s32.totalorder %s17, 1
      %p99 = por %p97, %p98
      %p101 = scmp.ne.s32.totalorder %s86, %s100
      %p102 = scmp.eq.s32.totalorder %s17, 0
      %p103 = por %p101, %p102
      %p104 = scmp.le.s32.totalorder 1, %s11
      %p105 = scmp.lt.s32.totalorder %s11, 3
      %p106 = pnand %p104, %p105
      %p107 = pneg %p106
      // Predicated region
      $region9: #{tpu_custom_call.1} parent=5 // pred_check
        _
      $region10: #{tpu_custom_call.1} parent=5 // pred_check_branch
        %109 = sbr.rel (%p106) target = $region12
      $region11: #{tpu_custom_call.1} parent=5 // pred_region
        %s110 = ssub.s32 %s11, 1
        // Predicated region
        $region13: #{tpu_custom_call.1} parent=11 // pred_check
          %p111 = pneg %p49
        $region14: #{tpu_custom_call.1} parent=11 // pred_check_branch
          %113 = sbr.rel (%p111) target = $region16
        $region15: #{tpu_custom_call.1} parent=11 // pred_region
          %s114 = smul.u32 2, %s21
          %s116 = ssub.s32 256, 256
          %117 = vsyncadd [#allocation9], %s116
          %s118 = smul.addr %s114, 128
          %s119 = scalar_lea.hbm %s0, %s118
          %s120 = sshll.u32 [#allocation8], 4
          %s121 = int_to_ptr.vmem [resolvable:$true] %s120
          %126 = dma.hbm_to_vmem [thread:$0]  %s119, 256, %s121, [#allocation9], 128, 128, 8
        $region16: #{tpu_custom_call.1} parent=11 // pred_fallthru
          _
        // Predicated region
        $region17: #{tpu_custom_call.1} parent=11 // pred_check
          %p127 = pneg %p75
        $region18: #{tpu_custom_call.1} parent=11 // pred_check_branch
          %129 = sbr.rel (%p127) target = $region20
        $region19: #{tpu_custom_call.1} parent=11 // pred_region
          %s130 = smul.u32 2, %s21
          %s132 = ssub.s32 256, 256
          %133 = vsyncadd [#allocation12], %s132
          %s134 = smul.addr %s130, 128
          %s135 = scalar_lea.hbm %s1, %s134
          %s136 = sshll.u32 [#allocation11], 4
          %s137 = int_to_ptr.vmem [resolvable:$true] %s136
          %142 = dma.hbm_to_vmem [thread:$0]  %s135, 256, %s137, [#allocation12], 128, 128, 8
        $region20: #{tpu_custom_call.1} parent=11 // pred_fallthru
          _
      $region12: #{tpu_custom_call.1} parent=5 // pred_fallthru
        _
      %p143 = scmp.lt.s32.totalorder %s11, 2
      // Predicated region
      $region21: #{tpu_custom_call.1} parent=5 // pred_check
        %p144 = pneg %p143
      $region22: #{tpu_custom_call.1} parent=5 // pred_check_branch
        %146 = sbr.rel (%p144) target = $region24
      $region23: #{tpu_custom_call.1} parent=5 // pred_region
        _
      $region24: #{tpu_custom_call.1} parent=5 // pred_fallthru
        _
      %p147 = scmp.le.s32.totalorder 1, %s11
      %p148 = scmp.lt.s32.totalorder %s11, 3
      %p149 = pnand %p147, %p148
      %p150 = pneg %p149
      // Predicated region
      $region25: #{tpu_custom_call.1} parent=5 // pred_check
        _
      $region26: #{tpu_custom_call.1} parent=5 // pred_check_branch
        %152 = sbr.rel (%p149) target = $region28
      $region27: #{tpu_custom_call.1} parent=5 // pred_region
        %s153 = ssub.s32 %s11, 1
        // Predicated region
        $region29: #{tpu_custom_call.1} parent=27 // pred_check
          %p154 = pneg %p49
        $region30: #{tpu_custom_call.1} parent=27 // pred_check_branch
          %156 = sbr.rel (%p154) target = $region32
        $region31: #{tpu_custom_call.1} parent=27 // pred_region
          %157 = dma.done [#allocation9], 256
        $region32: #{tpu_custom_call.1} parent=27 // pred_fallthru
          _
        // Predicated region
        $region33: #{tpu_custom_call.1} parent=27 // pred_check
          %p158 = pneg %p75
        $region34: #{tpu_custom_call.1} parent=27 // pred_check_branch
          %160 = sbr.rel (%p158) target = $region36
        $region35: #{tpu_custom_call.1} parent=27 // pred_region
          %161 = dma.done [#allocation12], 256
        $region36: #{tpu_custom_call.1} parent=27 // pred_fallthru
          _
        %p162 = pneg %p49
        %p163 = pneg %p46
        %p164 = pneg %p75
        %p165 = pneg %p72
        %p166 = pneg %p96
        %p167 = pneg %p93
        %s168 = smul.u32 2, %s21
        %s169 = smul.u32 2, %s21
        %p170 = scmp.eq.s32.totalorder %s21, 0
        %p171 = scmp.eq.s32.totalorder %s20, 0
        %p172 = pnand %p171, %p170
        %p173 = pneg %p172
        // Predicated region
        $region37: #{tpu_custom_call.1} parent=27 // pred_check
          _
        $region38: #{tpu_custom_call.1} parent=27 // pred_check_branch
          %175 = sbr.rel (%p172) target = $region40
        $region39: #{tpu_custom_call.1} parent=27 // pred_region
          %176 = vst [vmem:[#allocation2] sm:$0xff] inf
          %177 = vst [vmem:[#allocation3] sm:$0xff] -inf
          %178 = vst [vmem:[#allocation4] sm:$0xff] inf
          %179 = vst [vmem:[#allocation5] sm:$0xff] -inf
          %180 = vst [vmem:[#allocation6] sm:$0xff] 0.0
        $region40: #{tpu_custom_call.1} parent=27 // pred_fallthru
          _
        %p181 = scmp.ne.s32.totalorder %s21, 0
        %p182 = pnand %p171, %p181
        %p183 = pneg %p182
        // Predicated region
        $region41: #{tpu_custom_call.1} parent=27 // pred_check
          _
        $region42: #{tpu_custom_call.1} parent=27 // pred_check_branch
          %185 = sbr.rel (%p182) target = $region44
        $region43: #{tpu_custom_call.1} parent=27 // pred_region
          %v186 = vld [vmem:[#allocation8] sm:$0xff]
          %v187 = vld [vmem:[#allocation8 + $0x8] sm:$0xff]
          %v188 = vld [vmem:[#allocation11] sm:$0xff]
          %v189 = vld [vmem:[#allocation11 + $0x8] sm:$0xff]
          %v190 = vld [vmem:[#allocation2] sm:$0xff]
          %v191 = vmin.f32 %v186, %v187
          %v192 = vmin.f32 %v190, %v191
          %193 = vst [vmem:[#allocation2] sm:$0xff] %v192
          %v194 = vld [vmem:[#allocation3] sm:$0xff]
          %v195 = vmax.f32 %v186, %v187
          %v196 = vmax.f32 %v194, %v195
          %197 = vst [vmem:[#allocation3] sm:$0xff] %v196
          %v198 = vld [vmem:[#allocation4] sm:$0xff]
          %v199 = vmin.f32 %v188, %v189
          %v200 = vmin.f32 %v198, %v199
          %201 = vst [vmem:[#allocation4] sm:$0xff] %v200
          %v202 = vld [vmem:[#allocation5] sm:$0xff]
          %v203 = vmax.f32 %v188, %v189
          %v204 = vmax.f32 %v202, %v203
          %205 = vst [vmem:[#allocation5] sm:$0xff] %v204
        $region44: #{tpu_custom_call.1} parent=27 // pred_fallthru
          _
        // Predicated region
        $region45: #{tpu_custom_call.1} parent=27 // pred_check
          _
        $region46: #{tpu_custom_call.1} parent=27 // pred_check_branch
          %207 = sbr.rel (%p172) target = $region48
        $region47: #{tpu_custom_call.1} parent=27 // pred_region
          %v208 = vld [vmem:[#allocation8] sm:$0xff]
          %v209 = vld [vmem:[#allocation8 + $0x8] sm:$0xff]
          %v210 = vld [vmem:[#allocation11] sm:$0xff]
          %v211 = vld [vmem:[#allocation11 + $0x8] sm:$0xff]
          %v212 = vlaneseq
          %v213 = vshrl.u32 %v212, 7
          %v214 = vadd.s32 %v213, 8
          %v215 = vlaneseq
          %v216 = vand.u32 %v215, 127
          %v217 = vmul.u32 %v213, 128
          %v218 = vmul.u32 %v214, 128
          %v219 = vadd.s32 %v217, %v216
          %v220 = vadd.s32 %v218, %v216
          %vm221 = vcmp.lt.s32.totalorder %v219, 1536
          %vm222 = vcmp.lt.s32.totalorder %v220, 1536
          %v223 = vsel %vm221, %v208, inf
          %v224 = vsel %vm222, %v209, inf
          %v225 = vsel %vm221, %v208, -inf
          %v226 = vsel %vm222, %v209, -inf
          %v227 = vsel %vm221, %v210, inf
          %v228 = vsel %vm222, %v211, inf
          %v229 = vsel %vm221, %v210, -inf
          %v230 = vsel %vm222, %v211, -inf
          %v231 = vld [vmem:[#allocation2] sm:$0xff]
          %v232 = vmin.f32 %v223, %v224
          %v233 = vmin.f32 %v231, %v232
          %234 = vst [vmem:[#allocation2] sm:$0xff] %v233
          %v235 = vld [vmem:[#allocation3] sm:$0xff]
          %v236 = vmax.f32 %v225, %v226
          %v237 = vmax.f32 %v235, %v236
          %238 = vst [vmem:[#allocation3] sm:$0xff] %v237
          %v239 = vld [vmem:[#allocation4] sm:$0xff]
          %v240 = vmin.f32 %v227, %v228
          %v241 = vmin.f32 %v239, %v240
          %242 = vst [vmem:[#allocation4] sm:$0xff] %v241
          %v243 = vld [vmem:[#allocation5] sm:$0xff]
          %v244 = vmax.f32 %v229, %v230
          %v245 = vmax.f32 %v243, %v244
          %246 = vst [vmem:[#allocation5] sm:$0xff] %v245
        $region48: #{tpu_custom_call.1} parent=27 // pred_fallthru
          _
        %p247 = scmp.eq.s32.totalorder %s20, 1
        %p248 = pnand %p247, %p170
        %p249 = pneg %p248
        // Predicated region
        $region49: #{tpu_custom_call.1} parent=27 // pred_check
          _
        $region50: #{tpu_custom_call.1} parent=27 // pred_check_branch
          %251 = sbr.rel (%p248) target = $region52
        $region51: #{tpu_custom_call.1} parent=27 // pred_region
          %v252 = vld [vmem:[#allocation2] sm:$0xff]
          %253 = vmin.xlane.f32.xlu0 %v252
          %v254 = vpop.xlane.xlu0 %253
          %v255 = vrot.slane %v254, 4
          %v256 = vmin.f32 %v254, %v255
          %v257 = vrot.slane %v256, 2
          %v258 = vmin.f32 %v256, %v257
          %v259 = vrot.slane %v258, 1
          %v260 = vmin.f32 %v258, %v259
          %s261 = vtos %v260
          %v262 = vld [vmem:[#allocation3] sm:$0xff]
          %263 = vmax.xlane.f32.xlu0 %v262
          %v264 = vpop.xlane.xlu0 %263
          %v265 = vrot.slane %v264, 4
          %v266 = vmax.f32 %v264, %v265
          %v267 = vrot.slane %v266, 2
          %v268 = vmax.f32 %v266, %v267
          %v269 = vrot.slane %v268, 1
          %v270 = vmax.f32 %v268, %v269
          %s271 = vtos %v270
          %v272 = vld [vmem:[#allocation4] sm:$0xff]
          %273 = vmin.xlane.f32.xlu0 %v272
          %v274 = vpop.xlane.xlu0 %273
          %v275 = vrot.slane %v274, 4
          %v276 = vmin.f32 %v274, %v275
          %v277 = vrot.slane %v276, 2
          %v278 = vmin.f32 %v276, %v277
          %v279 = vrot.slane %v278, 1
          %v280 = vmin.f32 %v278, %v279
          %s281 = vtos %v280
          %v282 = vld [vmem:[#allocation5] sm:$0xff]
          %283 = vmax.xlane.f32.xlu0 %v282
          %v284 = vpop.xlane.xlu0 %283
          %v285 = vrot.slane %v284, 4
          %v286 = vmax.f32 %v284, %v285
          %v287 = vrot.slane %v286, 2
          %v288 = vmax.f32 %v286, %v287
          %v289 = vrot.slane %v288, 1
          %v290 = vmax.f32 %v288, %v289
          %s291 = vtos %v290
          %s292 = scalar_lea.smem [#allocation7], 0
          %293 = sst [smem:[%s292]] %s261
          %s294 = ssub.f32 %s271, %s261
          %s295 = sadd.f32 %s294, 1e-08
          %v296 = vstv %s295
          %v297 = vrcp.pop %v296
          %s298 = vtos %v297
          %s299 = scalar_lea.smem [#allocation7], 1
          %300 = sst [smem:[%s299]] %s298
          %s301 = scalar_lea.smem [#allocation7], 2
          %302 = sst [smem:[%s301]] %s281
          %s303 = ssub.f32 %s291, %s281
          %s304 = sadd.f32 %s303, 1e-08
          %v305 = vstv %s304
          %v306 = vrcp.pop %v305
          %s307 = vtos %v306
          %s308 = scalar_lea.smem [#allocation7], 3
          %309 = sst [smem:[%s308]] %s307
        $region52: #{tpu_custom_call.1} parent=27 // pred_fallthru
          _
        %p310 = pnand %p247, %p181
        %p311 = pneg %p310
        // Predicated region
        $region53: #{tpu_custom_call.1} parent=27 // pred_check
          _
        $region54: #{tpu_custom_call.1} parent=27 // pred_check_branch
          %313 = sbr.rel (%p310) target = $region56
        $region55: #{tpu_custom_call.1} parent=27 // pred_region
          %v314 = vld [vmem:[#allocation8] sm:$0xff]
          %v315 = vld [vmem:[#allocation8 + $0x8] sm:$0xff]
          %v316 = vld [vmem:[#allocation11] sm:$0xff]
          %v317 = vld [vmem:[#allocation11 + $0x8] sm:$0xff]
          %s318 = sld [smem:[#allocation7]]
          %v319 = vstv %s318
          %v320 = vsub.f32 %v314, %v319
          %v321 = vsub.f32 %v315, %v319
          %s322 = sld [smem:[#allocation7 + $0x1]]
          %v323 = vstv %s322
          %v324 = vmul.f32 %v320, %v323
          %v325 = vmul.f32 %v321, %v323
          %s326 = sld [smem:[#allocation7 + $0x2]]
          %v327 = vstv %s326
          %v328 = vsub.f32 %v316, %v327
          %v329 = vsub.f32 %v317, %v327
          %s330 = sld [smem:[#allocation7 + $0x3]]
          %v331 = vstv %s330
          %v332 = vmul.f32 %v328, %v331
          %v333 = vmul.f32 %v329, %v331
          %v334 = vsub.f32 %v324, %v332
          %v335 = vsub.f32 %v325, %v333
          %v336 = vand.u32 2147483647, %v334
          %v337 = vand.u32 2147483647, %v335
          %v338 = vld [vmem:[#allocation6] sm:$0xff]
          %v339 = vadd.f32 %v336, %v337
          %v340 = vadd.f32 %v338, %v339
          %341 = vst [vmem:[#allocation6] sm:$0xff] %v340
        $region56: #{tpu_custom_call.1} parent=27 // pred_fallthru
          _
        // Predicated region
        $region57: #{tpu_custom_call.1} parent=27 // pred_check
          _
        $region58: #{tpu_custom_call.1} parent=27 // pred_check_branch
          %343 = sbr.rel (%p248) target = $region60
        $region59: #{tpu_custom_call.1} parent=27 // pred_region
          %v344 = vld [vmem:[#allocation8] sm:$0xff]
          %v345 = vld [vmem:[#allocation8 + $0x8] sm:$0xff]
          %v346 = vld [vmem:[#allocation11] sm:$0xff]
          %v347 = vld [vmem:[#allocation11 + $0x8] sm:$0xff]
          %s348 = sld [smem:[#allocation7]]
          %v349 = vstv %s348
          %v350 = vsub.f32 %v344, %v349
          %v351 = vsub.f32 %v345, %v349
          %s352 = sld [smem:[#allocation7 + $0x1]]
          %v353 = vstv %s352
          %v354 = vmul.f32 %v350, %v353
          %v355 = vmul.f32 %v351, %v353
          %s356 = sld [smem:[#allocation7 + $0x2]]
          %v357 = vstv %s356
          %v358 = vsub.f32 %v346, %v357
          %v359 = vsub.f32 %v347, %v357
          %s360 = sld [smem:[#allocation7 + $0x3]]
          %v361 = vstv %s360
          %v362 = vmul.f32 %v358, %v361
          %v363 = vmul.f32 %v359, %v361
          %v364 = vsub.f32 %v354, %v362
          %v365 = vsub.f32 %v355, %v363
          %v366 = vand.u32 2147483647, %v364
          %v367 = vand.u32 2147483647, %v365
          %v368 = vlaneseq
          %v369 = vshrl.u32 %v368, 7
          %v370 = vadd.s32 %v369, 8
          %v371 = vlaneseq
          %v372 = vand.u32 %v371, 127
          %v373 = vmul.u32 %v369, 128
          %v374 = vmul.u32 %v370, 128
          %v375 = vadd.s32 %v373, %v372
          %v376 = vadd.s32 %v374, %v372
          %vm377 = vcmp.lt.s32.totalorder %v375, 1536
          %vm378 = vcmp.lt.s32.totalorder %v376, 1536
          %v379 = vsel %vm377, %v366, 0.0
          %v380 = vsel %vm378, %v367, 0.0
          %v381 = vld [vmem:[#allocation6] sm:$0xff]
          %v382 = vadd.f32 %v379, %v380
          %v383 = vadd.f32 %v381, %v382
          %384 = vst [vmem:[#allocation6] sm:$0xff] %v383
          %v385 = vld [vmem:[#allocation6] sm:$0xff]
          %386 = vadd.xlane.f32.xlu0 %v385
          %v387 = vpop.xlane.xlu0 %386
          %v388 = vrot.slane %v387, 4
          %v389 = vadd.f32 %v387, %v388
          %v390 = vrot.slane %v389, 2
          %v391 = vadd.f32 %v389, %v390
          %v392 = vrot.slane %v391, 1
          %v393 = vadd.f32 %v391, %v392
          %s394 = vtos %v393
          %s395 = smul.f32 %s394, 0.0006510417
          %s396 = scalar_lea.smem [#allocation13], 0
          %397 = sst [smem:[%s396]] %s395
        $region60: #{tpu_custom_call.1} parent=27 // pred_fallthru
          _
        // Predicated region
        $region61: #{tpu_custom_call.1} parent=27 // pred_check
          %p398 = pneg %p93
        $region62: #{tpu_custom_call.1} parent=27 // pred_check_branch
          %400 = sbr.rel (%p398) target = $region64
        $region63: #{tpu_custom_call.1} parent=27 // pred_region
          %s402 = ssub.s32 16, 16
          %403 = vsyncadd [#allocation10], %s402
          %406 = dma.smem_to_hbm [#allocation13], 16, %s2, [#allocation10]
        $region64: #{tpu_custom_call.1} parent=27 // pred_fallthru
          _
        // Predicated region
        $region65: #{tpu_custom_call.1} parent=27 // pred_check
          %p407 = pneg %p93
        $region66: #{tpu_custom_call.1} parent=27 // pred_check_branch
          %409 = sbr.rel (%p407) target = $region68
        $region67: #{tpu_custom_call.1} parent=27 // pred_region
          %410 = dma.done [#allocation10], 16
        $region68: #{tpu_custom_call.1} parent=27 // pred_fallthru
          _
        %411 = sfence
      $region28: #{tpu_custom_call.1} parent=5 // pred_fallthru
        _
      %p412 = scmp.le.s32.totalorder 2, %s11
      // Predicated region
      $region69: #{tpu_custom_call.1} parent=5 // pred_check
        %p413 = pneg %p412
      $region70: #{tpu_custom_call.1} parent=5 // pred_check_branch
        %415 = sbr.rel (%p413) target = $region72
      $region71: #{tpu_custom_call.1} parent=5 // pred_region
        %s416 = ssub.s32 %s11, 2
      $region72: #{tpu_custom_call.1} parent=5 // pred_fallthru
        _
    $region6: #{tpu_custom_call.1} parent=1 // loop_footer
      %s15 = sadd.s32 1, %s11
    $region7: #{tpu_custom_call.1} parent=1 // loop_footer_branch
      %10 = sbr.rel target = $region3
    $region8: #{tpu_custom_call.1} parent=1 // loop_exit
      _
    %417 = vsyncpa [#allocation9], 1
    %s418 = scalar_lea.sflag [#allocation9], 1
    %419 = vsyncpa %s418, 1
    %420 = vsyncpa [#allocation12], 1
    %421 = vsyncpa [#allocation10], 1
    %s422 = scalar_lea.sflag [#allocation10], 1
    %423 = vsyncpa %s422, 1

</llo_original>
